<compile_context>
chip_gen: v7x
topology: tpu7x:2x2x1
jax: 0.10.0
libtpu: 0.0.40
codegen_flags: <defaults>
</compile_context>

<pallas_src>
import math

import jax
import jax.numpy as jnp
from jax.experimental import pallas as pl
from jax.experimental.pallas import tpu as pltpu


def _round_up(a: int, b: int) -> int:
    return ((a + b - 1) // b) * b


def modality_encoding_kernel(x_ref, v_ref, o_ref):
    # x_ref/o_ref: (TM, W) tile of packed rows; v_ref: (1, W) packed modality
    # vector, broadcast over the TM rows.
    o_ref[...] = x_ref[...] + v_ref[...]


def modality_encoding(x, modality_vector, *, target_rows=512, max_tile_bytes=8 << 20):
    """Computes x + modality_vector broadcast over all leading dims.

    x: (..., D) array. modality_vector: (D,) learned parameter.
    """
    orig_shape = x.shape
    D = orig_shape[-1]
    N = x.size // D  # total rows after flattening leading dims
    dtype = x.dtype
    itemsize = jnp.dtype(dtype).itemsize

    xf = x.reshape(N, D)
    v = modality_vector.astype(dtype)

    # ---- Lane-dense packing: make the last dim a multiple of 128. ----
    if D % 128 == 0:
        W = D
        fold = 1
        v_row = v
    else:
        W = (D * 128) // math.gcd(D, 128)  # lcm(D, 128)
        fold = W // D
        v_row = jnp.tile(v, fold)  # row-major packing => tiled vector matches
    v_row = v_row.reshape(1, W)

    # ---- Tile-size selection (packed rows). ----
    sub = max(8, 32 // itemsize)              # sublane multiple: 8 f32 / 16 bf16 / 32 i8
    M = -(-N // fold)                         # packed rows needed (ceil)
    bytes_per_row = W * itemsize
    tm_cap = max(sub, (max_tile_bytes // bytes_per_row) // sub * sub)
    TM = min(_round_up(min(M, target_rows), sub), tm_cap)
    M_pad = _round_up(M, TM)
    grid = (M_pad // TM,)

    # ---- Pad + pack rows. ----
    n_pad_rows = M_pad * fold
    if n_pad_rows != N:
        xf = jnp.pad(xf, ((0, n_pad_rows - N), (0, 0)))
    x_packed = xf.reshape(M_pad, W)

    out_packed = pl.pallas_call(
        modality_encoding_kernel,
        out_shape=jax.ShapeDtypeStruct((M_pad, W), dtype),
        grid_spec=pltpu.PrefetchScalarGridSpec(
            num_scalar_prefetch=0,
            grid=grid,
            in_specs=[
                pl.BlockSpec((TM, W), lambda i: (i, 0)),
                pl.BlockSpec((1, W), lambda i: (0, 0)),
            ],
            out_specs=pl.BlockSpec((TM, W), lambda i: (i, 0)),
        ),
        compiler_params=pltpu.CompilerParams(
            dimension_semantics=("parallel",),
            vmem_limit_bytes=48 << 20,  # headroom under v7x's 64 MiB physical VMEM
        ),
    )(x_packed, v_row)

    # ---- Unpack and strip padding. ----
    return out_packed.reshape(M_pad * fold, D)[:N].reshape(orig_shape)


if __name__ == "__main__":
    key = jax.random.PRNGKey(0)
    k_x, k_v = jax.random.split(key)

    B, S, D = 2, 8, 32  # batch, seq, d_model
    x = jax.random.normal(k_x, (B, S, D), dtype=jnp.float32)
    # deterministic stand-in for the learned torch.randn(d_model) parameter
    modality_vector = jax.random.normal(k_v, (D,), dtype=jnp.float32)

    out = modality_encoding(x, modality_vector)
    out = jax.block_until_ready(out)

    # reference check
    ref = x + modality_vector[None, None, :]
    assert out.shape == ref.shape, "shape mismatch vs reference"
    assert jnp.allclose(out, ref, atol=1e-6), "mismatch vs reference"

    print("KERNEL_OK")
</pallas_src>

<mosaic_0001>
module attributes {stable_mosaic.version = 11 : i64} {
  func.func @modality_encoding_kernel(%arg0: i32, %arg1: memref<8x128xf32, #tpu.memory_space<vmem>>, %arg2: memref<1x128xf32, #tpu.memory_space<vmem>>, %arg3: memref<8x128xf32, #tpu.memory_space<vmem>>) attributes {dimension_semantics = [#tpu.dimension_semantics<parallel>], iteration_bounds = array<i64: 1>, scalar_prefetch = 0 : i64, scratch_operands = 0 : i64, tpu.core_type = #tpu.core_type<tc>, window_params = [{transform_indices = @transform_0, window_bounds = array<i64: 8, 128>}, {pipeline_mode = #tpu.pipeline_mode<synchronous>, transform_indices = @transform_1, window_bounds = array<i64: 1, 128>}, {transform_indices = @transform_2, window_bounds = array<i64: 8, 128>}]} {
    %c0 = arith.constant 0 : index
    %c0_0 = arith.constant 0 : index
    %0 = vector.load %arg1[%c0, %c0_0] : memref<8x128xf32, #tpu.memory_space<vmem>>, vector<8x128xf32>
    %c0_1 = arith.constant 0 : index
    %c0_2 = arith.constant 0 : index
    %1 = vector.load %arg2[%c0_1, %c0_2] : memref<1x128xf32, #tpu.memory_space<vmem>>, vector<1x128xf32>
    %2 = vector.broadcast %1 : vector<1x128xf32> to vector<8x128xf32>
    %3 = arith.addf %0, %2 : vector<8x128xf32>
    %c0_3 = arith.constant 0 : index
    %c0_4 = arith.constant 0 : index
    %4 = vector.load %arg3[%c0_3, %c0_4] : memref<8x128xf32, #tpu.memory_space<vmem>>, vector<8x128xf32>
    tpu.vector_store %arg3[%c0_3, %c0_4], %3 {strides = array<i32>} : memref<8x128xf32, #tpu.memory_space<vmem>>, vector<8x128xf32>,
    return
  }
  func.func @transform_0(%arg0: i32) -> (i32, i32) {
    %c0_i32 = arith.constant 0 : i32
    %c0_i32_0 = arith.constant 0 : i32
    return %arg0, %c0_i32 : i32, i32
  }
  func.func @transform_1(%arg0: i32) -> (i32, i32) {
    %c0_i32 = arith.constant 0 : i32
    %c0_i32_0 = arith.constant 0 : i32
    %c0_i32_1 = arith.constant 0 : i32
    return %c0_i32, %c0_i32_0 : i32, i32
  }
  func.func @transform_2(%arg0: i32) -> (i32, i32) {
    %c0_i32 = arith.constant 0 : i32
    %c0_i32_0 = arith.constant 0 : i32
    return %arg0, %c0_i32 : i32, i32
  }
}

</mosaic_0001>

<llo_original>
// kernel: tpu_custom_call.1
$region0: #{tpu_custom_call.1}
  #allocation0 [shape = 'u32[]', space=smem, size = 0x4, offset = 0x4, fixed_abs, tag = 'smem constant byte address 0x4 - core index']
  #allocation1 [shape = 'u32[144,128]{1,0:T(1,128)}', space=vmem, size = 0x12000, scoped, tag = 'internal scratch']
  %s0 = inlined_call_operand.hbm [shape: f32[8,128], index: 0, kind: input, shape index: {}]
  %s1 = inlined_call_operand.vmem [shape: f32[1,128], index: 1, kind: input, shape index: {}]
  %s2 = inlined_call_operand.hbm [shape: f32[8,128], index: 2, kind: output, shape index: {}]
  %s3 = sld [smem:[#allocation0]]
  $region22: #{tpu_custom_call.1} parent=0
    _
  %s5 = ssub.s32 1, %s3
  %s6 = scalar_select 0, %s5, %s3
  $region1: #{tpu_custom_call.1} parent=0
    #allocation2 [shape = 'u8[4096]{0}', space=vmem, size = 0x1000, scoped, tag = 'input window, operand 0, single buffered']
    #allocation3 [shape = 's32[1]{0}', space=sflag, size = 0x4, scoped, tag = 'scoped memory for tpu_custom_call.1']
    #allocation4 [shape = 's32[1]{0}', space=sflag, size = 0x4, scoped, tag = 'scoped memory for tpu_custom_call.1']
    #allocation5 [shape = 'u8[4096]{0}', space=vmem, size = 0x1000, scoped, tag = 'output window, operand 0, single buffered']
    %7 = vsyncpa [#allocation3], 0
    %8 = vsyncpa [#allocation4], 0
    // Predicated region
    $region2: #{tpu_custom_call.1} parent=1 // pred_check
      _
    $region3: #{tpu_custom_call.1} parent=1 // pred_check_branch
      %10 = sbr.rel (0) target = $region5
    $region4: #{tpu_custom_call.1} parent=1 // pred_region
      %s12 = ssub.s32 128, 128
      %13 = vsyncadd [#allocation3], %s12
      %s15 = sshll.u32 [#allocation2], 4
      %s16 = int_to_ptr.vmem [resolvable:$true] %s15
      %18 = dma.hbm_to_vmem [thread:$0]  %s0, 128, %s16, [#allocation3]
    $region5: #{tpu_custom_call.1} parent=1 // pred_fallthru
      _
    // Predicated region
    $region6: #{tpu_custom_call.1} parent=1 // pred_check
      _
    $region7: #{tpu_custom_call.1} parent=1 // pred_check_branch
      %20 = sbr.rel (0) target = $region9
    $region8: #{tpu_custom_call.1} parent=1 // pred_region
      _
    $region9: #{tpu_custom_call.1} parent=1 // pred_fallthru
      _
    // Predicated region
    $region10: #{tpu_custom_call.1} parent=1 // pred_check
      _
    $region11: #{tpu_custom_call.1} parent=1 // pred_check_branch
      %22 = sbr.rel (0) target = $region13
    $region12: #{tpu_custom_call.1} parent=1 // pred_region
      %23 = dma.done [#allocation3], 128
    $region13: #{tpu_custom_call.1} parent=1 // pred_fallthru
      _
    %v24 = vld [vmem:[#allocation2] sm:$0xff]
    %v25 = vld [vmem:[%s1] sm:$0x1]
    %v27 = vlaneseq
    %v28 = vshrl.u32 %v27, 7
    %v29 = vsub.s32 0, %v28
    %v30 = vrot.slane %v25, %v29
    %v32 = vadd.f32 %v24, %v30
    %33 = vst [vmem:[#allocation5] sm:$0xff] %v32
    // Predicated region
    $region14: #{tpu_custom_call.1} parent=1 // pred_check
      _
    $region15: #{tpu_custom_call.1} parent=1 // pred_check_branch
      %35 = sbr.rel (0) target = $region17
    $region16: #{tpu_custom_call.1} parent=1 // pred_region
      %s37 = ssub.s32 128, 128
      %38 = vsyncadd [#allocation4], %s37
      %s40 = sshll.u32 [#allocation5], 4
      %s41 = int_to_ptr.vmem [resolvable:$true] %s40
      %43 = dma.vmem_to_hbm [thread:$0]  %s41, 128, %s2, [#allocation4]
    $region17: #{tpu_custom_call.1} parent=1 // pred_fallthru
      _
    // Predicated region
    $region18: #{tpu_custom_call.1} parent=1 // pred_check
      _
    $region19: #{tpu_custom_call.1} parent=1 // pred_check_branch
      %45 = sbr.rel (0) target = $region21
    $region20: #{tpu_custom_call.1} parent=1 // pred_region
      %46 = dma.done [#allocation4], 128
    $region21: #{tpu_custom_call.1} parent=1 // pred_fallthru
      _
    %47 = vsyncpa [#allocation3], 1
    %48 = vsyncpa [#allocation4], 1

</llo_original>
